<compile_context>
chip_gen: v7x
topology: tpu7x:2x2x1
jax: 0.10.0
libtpu: 0.0.40
codegen_flags: <defaults>
</compile_context>

<pallas_src>
import functools
import numpy as np
import jax
import jax.numpy as jnp
from jax import lax
from jax.experimental import pallas as pl
from jax.experimental.pallas import tpu as pltpu


def _round_up(x, m):
    return (x + m - 1) // m * m


# ----------------------- fused forward + traceback kernel -----------------------
def _fused_kernel(feats_ref, trans_ref, lens_ref, dec_ref, part_sc, bp_sc,
                  *, B, T, TS, S, Spad, START_TAG, STOP_TAG):
    tb = pl.program_id(0)
    ntb = pl.num_programs(0)
    t_base = tb * TS

    tr = trans_ref[...]                                   # (T, T)  [from, to]
    lens = lens_ref[...]                                  # (B, 1)
    start_row = tr[START_TAG:START_TAG + 1, :]            # (1, T)
    # hoisted loop-invariant broadcasts
    trb = jnp.broadcast_to(tr[None, :, :], (B, T, T))     # (B, from, to)
    from_iota = lax.broadcasted_iota(jnp.int32, (B, T, T), 1)

    @pl.when(tb == 0)
    def _():
        part_sc[...] = jnp.zeros((B, T), jnp.float32)

    part = part_sc[...]                                   # (B, T) over "from"
    for j in range(TS):                                   # static unrolled inner loop
        t = t_base + j
        f_t = feats_ref[j]                                # (B, T) scores over "to"
        # max / first-argmax over "from" of (partition[b, from] + trans[from, to])
        cur = part[:, :, None] + trb                      # (B, from, to)
        best = jnp.max(cur, axis=1)                       # (B, T)
        is_max = cur == best[:, None, :]
        bp = jnp.min(jnp.where(is_max, from_iota, T), axis=1).astype(jnp.int32)
        new_part = best + f_t                             # feats only shifts the max value
        valid = t < lens                                  # (B, 1) prefix-mask validity
        bp = jnp.where(valid, bp, 0)                      # masked_fill_ on padded steps
        new_part = jnp.where(valid, new_part, part)       # masked carry (no history kept)
        if j == 0:
            # global t == 0: partition = feats[0] + trans[START_TAG, :], bp = 0
            is_first = t_base == 0
            new_part = jnp.where(is_first, f_t + start_row, new_part)
            bp = jnp.where(is_first, 0, bp)
        bp_sc[t] = bp                                     # persistent VMEM back-pointers
        part = new_part
    part_sc[...] = part

    @pl.when(tb == ntb - 1)
    def _():
        # pointer_init = first-argmax_from(partition_final[b, from] + trans[from, STOP_TAG])
        last_vals = part[:, :, None] + trb
        lbest = jnp.max(last_vals, axis=1)
        lis = last_vals == lbest[:, None, :]
        lbp = jnp.min(jnp.where(lis, from_iota, T), axis=1).astype(jnp.int32)
        ptr0 = lbp[:, STOP_TAG:STOP_TAG + 1]              # (B, 1)

        lane_T = lax.broadcasted_iota(jnp.int32, (B, T), 1)
        lane_S = lax.broadcasted_iota(jnp.int32, (B, Spad), 1)
        dec0 = jnp.where(lane_S == S - 1, ptr0, jnp.zeros((B, Spad), jnp.int32))

        def body(i, carry):
            ptr, dec = carry
            idx = S - 2 - i                               # reverse over time
            bp_nxt = bp_sc[idx + 1]                       # back-pointers of time idx+1
            gathered = jnp.sum(jnp.where(lane_T == ptr, bp_nxt, 0),
                               axis=1, keepdims=True)     # bp_nxt[b, ptr[b]]
            ptr = jnp.where(idx == lens - 1, ptr0, gathered).astype(jnp.int32)
            dec = jnp.where(lane_S == idx, ptr, dec)      # lane-dense accumulation
            return ptr, dec

        _, dec = lax.fori_loop(0, S - 1, body, (ptr0, dec0))
        dec_ref[...] = dec                                # single lane-dense store


# --------------------- fallback forward (Viterbi) kernel (two-pass) ---------------------
def _fwd_kernel(feats_ref, trans_ref, lens_ref, bp_ref, ptr0_ref, part_sc,
                *, B, T, TS, START_TAG, STOP_TAG):
    tb = pl.program_id(0)
    ntb = pl.num_programs(0)
    t_base = tb * TS

    tr = trans_ref[...]
    lens = lens_ref[...]
    start_row = tr[START_TAG:START_TAG + 1, :]
    trb = jnp.broadcast_to(tr[None, :, :], (B, T, T))
    from_iota = lax.broadcasted_iota(jnp.int32, (B, T, T), 1)

    @pl.when(tb == 0)
    def _():
        part_sc[...] = jnp.zeros((B, T), jnp.float32)

    part = part_sc[...]
    for j in range(TS):
        t = t_base + j
        f_t = feats_ref[j]
        cur = part[:, :, None] + trb
        best = jnp.max(cur, axis=1)
        is_max = cur == best[:, None, :]
        bp = jnp.min(jnp.where(is_max, from_iota, T), axis=1).astype(jnp.int32)
        new_part = best + f_t
        valid = t < lens
        bp = jnp.where(valid, bp, 0)
        new_part = jnp.where(valid, new_part, part)
        if j == 0:
            is_first = t_base == 0
            new_part = jnp.where(is_first, f_t + start_row, new_part)
            bp = jnp.where(is_first, 0, bp)
        bp_ref[j] = bp
        part = new_part
    part_sc[...] = part

    @pl.when(tb == ntb - 1)
    def _():
        last_vals = part[:, :, None] + trb
        lbest = jnp.max(last_vals, axis=1)
        lis = last_vals == lbest[:, None, :]
        lbp = jnp.min(jnp.where(lis, from_iota, T), axis=1).astype(jnp.int32)
        ptr0_ref[...] = lbp[:, STOP_TAG:STOP_TAG + 1]


# ------------------------- fallback traceback kernel (two-pass) -------------------------
def _traceback_kernel(bp_ref, ptr0_ref, lens_ref, dec_ref, ptr_sc, head_sc,
                      *, B, T, TS, S):
    g = pl.program_id(0)
    ntb = pl.num_programs(0)
    rb = ntb - 1 - g
    t_base = rb * TS

    @pl.when(g == 0)
    def _():
        ptr_sc[...] = jnp.zeros((B, 1), jnp.int32)
        head_sc[...] = jnp.zeros((B, T), jnp.int32)

    lens = lens_ref[...]
    ptr0 = ptr0_ref[...]
    bp_above = head_sc[...]
    head_sc[...] = bp_ref[0]

    lane_T = lax.broadcasted_iota(jnp.int32, (B, T), 1)
    lane_TS = lax.broadcasted_iota(jnp.int32, (B, TS), 1)

    ptr = ptr_sc[...]
    dec = jnp.zeros((B, TS), jnp.int32)
    for j in range(TS - 1, -1, -1):
        idx = t_base + j
        bp_nxt = bp_above if j == TS - 1 else bp_ref[j + 1]
        gathered = jnp.sum(jnp.where(lane_T == ptr, bp_nxt, 0),
                           axis=1, keepdims=True)
        take_init = jnp.logical_or(idx == S - 1, idx == lens - 1)
        ptr = jnp.where(take_init, ptr0, gathered).astype(jnp.int32)
        dec = jnp.where(lane_TS == j, ptr, dec)
    ptr_sc[...] = ptr
    dec_ref[0] = dec


# ------------------------------------- wrapper --------------------------------------
def crf_viterbi_decode(feats, mask, transitions, *, time_block=32,
                       max_fused_vmem_bytes=20 * 1024 * 1024,
                       force_two_pass=False):
    """Pallas implementation of CRF._viterbi_decode (== CRF.forward).

    feats:       (batch, seq_len, tag_size) float32
    mask:        (batch, seq_len) {0,1}, prefix mask, >= 1 valid step per row
    transitions: (tag_size, tag_size) float32
    returns (path_score=None, decode_idx (batch, seq_len) int32)
    """
    B, S, T = feats.shape
    START_TAG, STOP_TAG = T - 2, T - 1

    TS = max(1, min(int(time_block), S, 64))
    num_tb = (S + TS - 1) // TS
    Spad = num_tb * TS

    feats_t = jnp.transpose(feats, (1, 0, 2)).astype(jnp.float32)       # (S, B, T)
    if Spad != S:
        feats_t = jnp.pad(feats_t, ((0, Spad - S), (0, 0), (0, 0)))
    trans = transitions.astype(jnp.float32)
    lens = jnp.sum(mask.astype(jnp.int32), axis=1, keepdims=True)       # (B, 1)

    # VMEM estimate (with (8,128) layout padding) for the fused single-call path.
    Bp, Tp = _round_up(B, 8), _round_up(T, 128)
    Sp_lane = _round_up(Spad, 128)
    fused_bytes = 4 * (Spad * Bp * Tp            # bp scratch
                       + 2 * TS * Bp * Tp        # feats double buffer
                       + 2 * Bp * Sp_lane        # decode output block
                       + Bp * Tp                 # partition scratch
                       + _round_up(T, 8) * Tp    # transitions block
                       + Bp * 128)               # lengths block

    if (not force_two_pass) and fused_bytes <= max_fused_vmem_bytes:
        kern = functools.partial(_fused_kernel, B=B, T=T, TS=TS, S=S, Spad=Spad,
                                 START_TAG=START_TAG, STOP_TAG=STOP_TAG)
        dec = pl.pallas_call(
            kern,
            grid_spec=pltpu.PrefetchScalarGridSpec(
                num_scalar_prefetch=0,
                grid=(num_tb,),
                in_specs=[
                    pl.BlockSpec((TS, B, T), lambda tb: (tb, 0, 0)),
                    pl.BlockSpec((T, T), lambda tb: (0, 0)),
                    pl.BlockSpec((B, 1), lambda tb: (0, 0)),
                ],
                out_specs=pl.BlockSpec((B, Spad), lambda tb: (0, 0)),
                scratch_shapes=[pltpu.VMEM((B, T), jnp.float32),
                                pltpu.VMEM((Spad, B, T), jnp.int32)],
            ),
            out_shape=jax.ShapeDtypeStruct((B, Spad), jnp.int32),
            compiler_params=pltpu.CompilerParams(
                dimension_semantics=("arbitrary",),
                vmem_limit_bytes=32 * 1024 * 1024),
        )(feats_t, trans, lens)
        return None, dec[:, :S]

    # -------- fallback: two-pass (forward pass + traceback pass) --------
    fwd = functools.partial(_fwd_kernel, B=B, T=T, TS=TS,
                            START_TAG=START_TAG, STOP_TAG=STOP_TAG)
    bp, ptr0 = pl.pallas_call(
        fwd,
        grid_spec=pltpu.PrefetchScalarGridSpec(
            num_scalar_prefetch=0,
            grid=(num_tb,),
            in_specs=[
                pl.BlockSpec((TS, B, T), lambda tb: (tb, 0, 0)),
                pl.BlockSpec((T, T), lambda tb: (0, 0)),
                pl.BlockSpec((B, 1), lambda tb: (0, 0)),
            ],
            out_specs=[
                pl.BlockSpec((TS, B, T), lambda tb: (tb, 0, 0)),
                pl.BlockSpec((B, 1), lambda tb: (0, 0)),
            ],
            scratch_shapes=[pltpu.VMEM((B, T), jnp.float32)],
        ),
        out_shape=(
            jax.ShapeDtypeStruct((Spad, B, T), jnp.int32),
            jax.ShapeDtypeStruct((B, 1), jnp.int32),
        ),
        compiler_params=pltpu.CompilerParams(dimension_semantics=("arbitrary",)),
    )(feats_t, trans, lens)

    tbk = functools.partial(_traceback_kernel, B=B, T=T, TS=TS, S=S)
    dec = pl.pallas_call(
        tbk,
        grid_spec=pltpu.PrefetchScalarGridSpec(
            num_scalar_prefetch=0,
            grid=(num_tb,),
            in_specs=[
                pl.BlockSpec((TS, B, T), lambda g: (num_tb - 1 - g, 0, 0)),
                pl.BlockSpec((B, 1), lambda g: (0, 0)),
                pl.BlockSpec((B, 1), lambda g: (0, 0)),
            ],
            out_specs=pl.BlockSpec((1, B, TS), lambda g: (num_tb - 1 - g, 0, 0)),
            scratch_shapes=[pltpu.VMEM((B, 1), jnp.int32),
                            pltpu.VMEM((B, T), jnp.int32)],
        ),
        out_shape=jax.ShapeDtypeStruct((num_tb, B, TS), jnp.int32),
        compiler_params=pltpu.CompilerParams(dimension_semantics=("arbitrary",)),
    )(bp, ptr0, lens)

    decode_idx = jnp.transpose(dec, (1, 0, 2)).reshape(B, Spad)[:, :S]  # (B, S)
    return None, decode_idx


# ---------------------- pure-JAX reference (faithful to the module) ----------------------
def crf_viterbi_reference(feats, mask, transitions):
    B, S, T = feats.shape
    START_TAG, STOP_TAG = T - 2, T - 1
    lengths = jnp.sum(mask.astype(jnp.int32), axis=1)
    mask_t = jnp.transpose(mask, (1, 0))
    scores = feats.transpose(1, 0, 2)[:, :, None, :] + transitions[None, None, :, :]
    partition = scores[0, :, START_TAG, :]
    ph, bps = [partition], []
    for t in range(1, S):
        cur = scores[t] + partition[:, :, None]
        partition = jnp.max(cur, axis=1)
        bp = jnp.argmax(cur, axis=1).astype(jnp.int32)
        bp = jnp.where(mask_t[t][:, None] != 0, bp, 0)
        ph.append(partition)
        bps.append(bp)
    ph = jnp.stack(ph, axis=1)
    last_part = jnp.take_along_axis(ph, (lengths - 1)[:, None, None], axis=1)[:, 0, :]
    last_values = last_part[:, :, None] + transitions[None, :, :]
    pointer = jnp.argmax(last_values, axis=1)[:, STOP_TAG].astype(jnp.int32)
    bps.append(jnp.zeros((B, T), jnp.int32))
    bp_arr = jnp.stack(bps, axis=0)
    tidx = jnp.arange(S)
    bp_arr = jnp.where(tidx[:, None, None] == (lengths - 1)[None, :, None],
                       pointer[None, :, None], bp_arr)
    decode = [None] * S
    decode[S - 1] = pointer
    for idx in range(S - 2, -1, -1):
        pointer = jnp.take_along_axis(bp_arr[idx], pointer[:, None], axis=1)[:, 0]
        decode[idx] = pointer
    return jnp.stack(decode, axis=1)


if __name__ == "__main__":
    key = jax.random.PRNGKey(0)

    def run_case(case_key, B, S, target_size, lengths, time_block,
                 force_two_pass=False):
        T = target_size + 2                               # tag_size (+START, +STOP)
        START_TAG, STOP_TAG = T - 2, T - 1
        k_feats, k_trans = jax.random.split(case_key, 2)
        feats = jax.random.normal(k_feats, (B, S, T), dtype=jnp.float32)
        # parameters following CRF.__init__ (forbidden transitions);
        # small random values stand in for a trained parameter.
        transitions = 0.1 * jax.random.normal(k_trans, (T, T), dtype=jnp.float32)
        transitions = transitions.at[:, START_TAG].set(-10000.0)
        transitions = transitions.at[STOP_TAG, :].set(-10000.0)
        lengths = jnp.asarray(lengths, dtype=jnp.int32)
        mask = (jnp.arange(S)[None, :] < lengths[:, None]).astype(jnp.int32)

        _, decode_idx = crf_viterbi_decode(feats, mask, transitions,
                                           time_block=time_block,
                                           force_two_pass=force_two_pass)
        decode_idx = jax.block_until_ready(decode_idx)
        ref = jax.block_until_ready(crf_viterbi_reference(feats, mask, transitions))
        assert np.array_equal(np.asarray(decode_idx), np.asarray(ref)), (decode_idx, ref)

    k1, k2, k3 = jax.random.split(key, 3)
    # small shapes consistent with the module (tag_size = target_size + 2), fused path
    run_case(k1, B=2, S=8, target_size=5, lengths=[8, 5], time_block=32)
    # multi-time-block fused path (3 blocks, padded 19 -> 24) with short rows
    run_case(k2, B=3, S=19, target_size=5, lengths=[19, 11, 1], time_block=8)
    # exercise the two-pass fallback path as well
    run_case(k3, B=3, S=19, target_size=5, lengths=[19, 11, 1], time_block=8,
             force_two_pass=True)

    print("KERNEL_OK")
</pallas_src>

<mosaic_0001>
module attributes {stable_mosaic.version = 11 : i64} {
  func.func @_fused_kernel(%arg0: i32, %arg1: memref<8x2x7xf32, #tpu.memory_space<vmem>>, %arg2: memref<7x7xf32, #tpu.memory_space<vmem>>, %arg3: memref<2x1xi32, #tpu.memory_space<vmem>>, %arg4: memref<2x8xi32, #tpu.memory_space<vmem>>, %arg5: memref<2x7xf32, #tpu.memory_space<vmem>>, %arg6: memref<8x2x7xi32, #tpu.memory_space<vmem>>) attributes {dimension_semantics = [#tpu.dimension_semantics<arbitrary>], iteration_bounds = array<i64: 1>, scalar_prefetch = 0 : i64, scratch_operands = 2 : i64, tpu.core_type = #tpu.core_type<tc>, window_params = [{transform_indices = @transform_0, window_bounds = array<i64: 8, 2, 7>}, {pipeline_mode = #tpu.pipeline_mode<synchronous>, transform_indices = @transform_1, window_bounds = array<i64: 7, 7>}, {pipeline_mode = #tpu.pipeline_mode<synchronous>, transform_indices = @transform_2, window_bounds = array<i64: 2, 1>}, {pipeline_mode = #tpu.pipeline_mode<synchronous>, transform_indices = @transform_3, window_bounds = array<i64: 2, 8>}]} {
    %c8_i32 = arith.constant 8 : i32
    %0 = arith.muli %arg0, %c8_i32 : i32
    %c0 = arith.constant 0 : index
    %c0_0 = arith.constant 0 : index
    %1 = vector.load %arg2[%c0, %c0_0] : memref<7x7xf32, #tpu.memory_space<vmem>>, vector<7x7xf32>
    %c0_1 = arith.constant 0 : index
    %c0_2 = arith.constant 0 : index
    %2 = vector.load %arg3[%c0_1, %c0_2] : memref<2x1xi32, #tpu.memory_space<vmem>>, vector<2x1xi32>
    %3 = vector.extract_strided_slice %1 {offsets = [5, 0], sizes = [1, 7], strides = [1, 1]} : vector<7x7xf32> to vector<1x7xf32>
    %4 = vector.shape_cast %1 : vector<7x7xf32> to vector<1x7x7xf32>
    %5 = vector.shape_cast %4 : vector<1x7x7xf32> to vector<1x7x7xf32>
    %6 = vector.broadcast %5 : vector<1x7x7xf32> to vector<2x7x7xf32>
    %7 = tpu.iota {dimensions = array<i32: 1>} : vector<2x7x7xi32>
    %c0_i32 = arith.constant 0 : i32
    %8 = arith.cmpi eq, %arg0, %c0_i32 : i32
    %9 = arith.extui %8 : i1 to i32
    %c0_i32_3 = arith.constant 0 : i32
    %10 = arith.cmpi ne, %9, %c0_i32_3 : i32
    scf.if %10 {
      %cst_77 = arith.constant 0.000000e+00 : f32
      %238 = vector.broadcast %cst_77 : f32 to vector<2x7xf32>
      %c0_78 = arith.constant 0 : index
      %c0_79 = arith.constant 0 : index
      %239 = vector.load %arg5[%c0_78, %c0_79] : memref<2x7xf32, #tpu.memory_space<vmem>>, vector<2x7xf32>
      tpu.vector_store %arg5[%c0_78, %c0_79], %238 {strides = array<i32>} : memref<2x7xf32, #tpu.memory_space<vmem>>, vector<2x7xf32>,
    } else {
    }
    %c0_4 = arith.constant 0 : index
    %c0_5 = arith.constant 0 : index
    %11 = vector.load %arg5[%c0_4, %c0_5] : memref<2x7xf32, #tpu.memory_space<vmem>>, vector<2x7xf32>
    %c0_i32_6 = arith.constant 0 : i32
    %12 = arith.addi %0, %c0_i32_6 : i32
    %c0_7 = arith.constant 0 : index
    %c0_8 = arith.constant 0 : index
    %c0_9 = arith.constant 0 : index
    %13 = vector.load %arg1[%c0_7, %c0_8, %c0_9] : memref<8x2x7xf32, #tpu.memory_space<vmem>>, vector<1x2x7xf32>
    %14 = vector.shape_cast %13 : vector<1x2x7xf32> to vector<2x7xf32>
    %15 = vector.shape_cast %11 : vector<2x7xf32> to vector<2x7x1xf32>
    %16 = vector.broadcast %15 : vector<2x7x1xf32> to vector<2x7x7xf32>
    %17 = arith.addf %16, %6 : vector<2x7x7xf32>
    %cst = arith.constant dense<0xFF800000> : vector<2x7xf32>
    %18 = vector.multi_reduction <maximumf>, %17, %cst [1] : vector<2x7x7xf32> to vector<2x7xf32>
    %19 = vector.shape_cast %18 : vector<2x7xf32> to vector<2x1x7xf32>
    %20 = vector.broadcast %19 : vector<2x1x7xf32> to vector<2x7x7xf32>
    %21 = arith.cmpf oeq, %17, %20 : vector<2x7x7xf32>
    %c7_i32 = arith.constant 7 : i32
    %22 = vector.broadcast %c7_i32 : i32 to vector<2x7x7xi32>
    %23 = arith.select %21, %7, %22 : vector<2x7x7xi1>, vector<2x7x7xi32>
    %cst_10 = arith.constant dense<2147483647> : vector<2x7xi32>
    %24 = vector.multi_reduction <minsi>, %23, %cst_10 [1] : vector<2x7x7xi32> to vector<2x7xi32>
    %25 = arith.addf %18, %14 : vector<2x7xf32>
    %26 = vector.broadcast %12 : i32 to vector<2x1xi32>
    %27 = arith.cmpi slt, %26, %2 : vector<2x1xi32>
    %c0_i32_11 = arith.constant 0 : i32
    %28 = vector.shape_cast %27 : vector<2x1xi1> to vector<2x1xi1>
    %29 = vector.broadcast %28 : vector<2x1xi1> to vector<2x7xi1>
    %30 = vector.broadcast %c0_i32_11 : i32 to vector<2x7xi32>
    %31 = arith.select %29, %24, %30 : vector<2x7xi1>, vector<2x7xi32>
    %32 = vector.shape_cast %27 : vector<2x1xi1> to vector<2x1xi1>
    %33 = vector.broadcast %32 : vector<2x1xi1> to vector<2x7xi1>
    %34 = arith.select %33, %25, %11 : vector<2x7xi1>, vector<2x7xf32>
    %c0_i32_12 = arith.constant 0 : i32
    %35 = arith.cmpi eq, %0, %c0_i32_12 : i32
    %36 = vector.broadcast %3 : vector<1x7xf32> to vector<2x7xf32>
    %37 = arith.addf %14, %36 : vector<2x7xf32>
    %38 = arith.select %35, %37, %34 : vector<2x7xf32>
    %c0_i32_13 = arith.constant 0 : i32
    %39 = vector.broadcast %c0_i32_13 : i32 to vector<2x7xi32>
    %40 = arith.select %35, %39, %31 : vector<2x7xi32>
    %41 = arith.index_cast %12 : i32 to index
    %c0_14 = arith.constant 0 : index
    %c0_15 = arith.constant 0 : index
    %42 = vector.load %arg6[%41, %c0_14, %c0_15] : memref<8x2x7xi32, #tpu.memory_space<vmem>>, vector<1x2x7xi32>
    %43 = vector.shape_cast %42 : vector<1x2x7xi32> to vector<2x7xi32>
    %44 = vector.shape_cast %40 : vector<2x7xi32> to vector<1x2x7xi32>
    tpu.vector_store %arg6[%41, %c0_14, %c0_15], %44 {strides = array<i32>} : memref<8x2x7xi32, #tpu.memory_space<vmem>>, vector<1x2x7xi32>,
    %c1_i32 = arith.constant 1 : i32
    %45 = arith.addi %0, %c1_i32 : i32
    %c1 = arith.constant 1 : index
    %c0_16 = arith.constant 0 : index
    %c0_17 = arith.constant 0 : index
    %46 = vector.load %arg1[%c1, %c0_16, %c0_17] : memref<8x2x7xf32, #tpu.memory_space<vmem>>, vector<1x2x7xf32>
    %47 = vector.shape_cast %46 : vector<1x2x7xf32> to vector<2x7xf32>
    %48 = vector.shape_cast %38 : vector<2x7xf32> to vector<2x7x1xf32>
    %49 = vector.broadcast %48 : vector<2x7x1xf32> to vector<2x7x7xf32>
    %50 = arith.addf %49, %6 : vector<2x7x7xf32>
    %cst_18 = arith.constant dense<0xFF800000> : vector<2x7xf32>
    %51 = vector.multi_reduction <maximumf>, %50, %cst_18 [1] : vector<2x7x7xf32> to vector<2x7xf32>
    %52 = vector.shape_cast %51 : vector<2x7xf32> to vector<2x1x7xf32>
    %53 = vector.broadcast %52 : vector<2x1x7xf32> to vector<2x7x7xf32>
    %54 = arith.cmpf oeq, %50, %53 : vector<2x7x7xf32>
    %c7_i32_19 = arith.constant 7 : i32
    %55 = vector.broadcast %c7_i32_19 : i32 to vector<2x7x7xi32>
    %56 = arith.select %54, %7, %55 : vector<2x7x7xi1>, vector<2x7x7xi32>
    %cst_20 = arith.constant dense<2147483647> : vector<2x7xi32>
    %57 = vector.multi_reduction <minsi>, %56, %cst_20 [1] : vector<2x7x7xi32> to vector<2x7xi32>
    %58 = arith.addf %51, %47 : vector<2x7xf32>
    %59 = vector.broadcast %45 : i32 to vector<2x1xi32>
    %60 = arith.cmpi slt, %59, %2 : vector<2x1xi32>
    %c0_i32_21 = arith.constant 0 : i32
    %61 = vector.shape_cast %60 : vector<2x1xi1> to vector<2x1xi1>
    %62 = vector.broadcast %61 : vector<2x1xi1> to vector<2x7xi1>
    %63 = vector.broadcast %c0_i32_21 : i32 to vector<2x7xi32>
    %64 = arith.select %62, %57, %63 : vector<2x7xi1>, vector<2x7xi32>
    %65 = vector.shape_cast %60 : vector<2x1xi1> to vector<2x1xi1>
    %66 = vector.broadcast %65 : vector<2x1xi1> to vector<2x7xi1>
    %67 = arith.select %66, %58, %38 : vector<2x7xi1>, vector<2x7xf32>
    %68 = arith.index_cast %45 : i32 to index
    %c0_22 = arith.constant 0 : index
    %c0_23 = arith.constant 0 : index
    %69 = vector.load %arg6[%68, %c0_22, %c0_23] : memref<8x2x7xi32, #tpu.memory_space<vmem>>, vector<1x2x7xi32>
    %70 = vector.shape_cast %69 : vector<1x2x7xi32> to vector<2x7xi32>
    %71 = vector.shape_cast %64 : vector<2x7xi32> to vector<1x2x7xi32>
    tpu.vector_store %arg6[%68, %c0_22, %c0_23], %71 {strides = array<i32>} : memref<8x2x7xi32, #tpu.memory_space<vmem>>, vector<1x2x7xi32>,
    %c2_i32 = arith.constant 2 : i32
    %72 = arith.addi %0, %c2_i32 : i32
    %c2 = arith.constant 2 : index
    %c0_24 = arith.constant 0 : index
    %c0_25 = arith.constant 0 : index
    %73 = vector.load %arg1[%c2, %c0_24, %c0_25] : memref<8x2x7xf32, #tpu.memory_space<vmem>>, vector<1x2x7xf32>
    %74 = vector.shape_cast %73 : vector<1x2x7xf32> to vector<2x7xf32>
    %75 = vector.shape_cast %67 : vector<2x7xf32> to vector<2x7x1xf32>
    %76 = vector.broadcast %75 : vector<2x7x1xf32> to vector<2x7x7xf32>
    %77 = arith.addf %76, %6 : vector<2x7x7xf32>
    %cst_26 = arith.constant dense<0xFF800000> : vector<2x7xf32>
    %78 = vector.multi_reduction <maximumf>, %77, %cst_26 [1] : vector<2x7x7xf32> to vector<2x7xf32>
    %79 = vector.shape_cast %78 : vector<2x7xf32> to vector<2x1x7xf32>
    %80 = vector.broadcast %79 : vector<2x1x7xf32> to vector<2x7x7xf32>
    %81 = arith.cmpf oeq, %77, %80 : vector<2x7x7xf32>
    %c7_i32_27 = arith.constant 7 : i32
    %82 = vector.broadcast %c7_i32_27 : i32 to vector<2x7x7xi32>
    %83 = arith.select %81, %7, %82 : vector<2x7x7xi1>, vector<2x7x7xi32>
    %cst_28 = arith.constant dense<2147483647> : vector<2x7xi32>
    %84 = vector.multi_reduction <minsi>, %83, %cst_28 [1] : vector<2x7x7xi32> to vector<2x7xi32>
    %85 = arith.addf %78, %74 : vector<2x7xf32>
    %86 = vector.broadcast %72 : i32 to vector<2x1xi32>
    %87 = arith.cmpi slt, %86, %2 : vector<2x1xi32>
    %c0_i32_29 = arith.constant 0 : i32
    %88 = vector.shape_cast %87 : vector<2x1xi1> to vector<2x1xi1>
    %89 = vector.broadcast %88 : vector<2x1xi1> to vector<2x7xi1>
    %90 = vector.broadcast %c0_i32_29 : i32 to vector<2x7xi32>
    %91 = arith.select %89, %84, %90 : vector<2x7xi1>, vector<2x7xi32>
    %92 = vector.shape_cast %87 : vector<2x1xi1> to vector<2x1xi1>
    %93 = vector.broadcast %92 : vector<2x1xi1> to vector<2x7xi1>
    %94 = arith.select %93, %85, %67 : vector<2x7xi1>, vector<2x7xf32>
    %95 = arith.index_cast %72 : i32 to index
    %c0_30 = arith.constant 0 : index
    %c0_31 = arith.constant 0 : index
    %96 = vector.load %arg6[%95, %c0_30, %c0_31] : memref<8x2x7xi32, #tpu.memory_space<vmem>>, vector<1x2x7xi32>
    %97 = vector.shape_cast %96 : vector<1x2x7xi32> to vector<2x7xi32>
    %98 = vector.shape_cast %91 : vector<2x7xi32> to vector<1x2x7xi32>
    tpu.vector_store %arg6[%95, %c0_30, %c0_31], %98 {strides = array<i32>} : memref<8x2x7xi32, #tpu.memory_space<vmem>>, vector<1x2x7xi32>,
    %c3_i32 = arith.constant 3 : i32
    %99 = arith.addi %0, %c3_i32 : i32
    %c3 = arith.constant 3 : index
    %c0_32 = arith.constant 0 : index
    %c0_33 = arith.constant 0 : index
    %100 = vector.load %arg1[%c3, %c0_32, %c0_33] : memref<8x2x7xf32, #tpu.memory_space<vmem>>, vector<1x2x7xf32>
    %101 = vector.shape_cast %100 : vector<1x2x7xf32> to vector<2x7xf32>
    %102 = vector.shape_cast %94 : vector<2x7xf32> to vector<2x7x1xf32>
    %103 = vector.broadcast %102 : vector<2x7x1xf32> to vector<2x7x7xf32>
    %104 = arith.addf %103, %6 : vector<2x7x7xf32>
    %cst_34 = arith.constant dense<0xFF800000> : vector<2x7xf32>
    %105 = vector.multi_reduction <maximumf>, %104, %cst_34 [1] : vector<2x7x7xf32> to vector<2x7xf32>
    %106 = vector.shape_cast %105 : vector<2x7xf32> to vector<2x1x7xf32>
    %107 = vector.broadcast %106 : vector<2x1x7xf32> to vector<2x7x7xf32>
    %108 = arith.cmpf oeq, %104, %107 : vector<2x7x7xf32>
    %c7_i32_35 = arith.constant 7 : i32
    %109 = vector.broadcast %c7_i32_35 : i32 to vector<2x7x7xi32>
    %110 = arith.select %108, %7, %109 : vector<2x7x7xi1>, vector<2x7x7xi32>
    %cst_36 = arith.constant dense<2147483647> : vector<2x7xi32>
    %111 = vector.multi_reduction <minsi>, %110, %cst_36 [1] : vector<2x7x7xi32> to vector<2x7xi32>
    %112 = arith.addf %105, %101 : vector<2x7xf32>
    %113 = vector.broadcast %99 : i32 to vector<2x1xi32>
    %114 = arith.cmpi slt, %113, %2 : vector<2x1xi32>
    %c0_i32_37 = arith.constant 0 : i32
    %115 = vector.shape_cast %114 : vector<2x1xi1> to vector<2x1xi1>
    %116 = vector.broadcast %115 : vector<2x1xi1> to vector<2x7xi1>
    %117 = vector.broadcast %c0_i32_37 : i32 to vector<2x7xi32>
    %118 = arith.select %116, %111, %117 : vector<2x7xi1>, vector<2x7xi32>
    %119 = vector.shape_cast %114 : vector<2x1xi1> to vector<2x1xi1>
    %120 = vector.broadcast %119 : vector<2x1xi1> to vector<2x7xi1>
    %121 = arith.select %120, %112, %94 : vector<2x7xi1>, vector<2x7xf32>
    %122 = arith.index_cast %99 : i32 to index
    %c0_38 = arith.constant 0 : index
    %c0_39 = arith.constant 0 : index
    %123 = vector.load %arg6[%122, %c0_38, %c0_39] : memref<8x2x7xi32, #tpu.memory_space<vmem>>, vector<1x2x7xi32>
    %124 = vector.shape_cast %123 : vector<1x2x7xi32> to vector<2x7xi32>
    %125 = vector.shape_cast %118 : vector<2x7xi32> to vector<1x2x7xi32>
    tpu.vector_store %arg6[%122, %c0_38, %c0_39], %125 {strides = array<i32>} : memref<8x2x7xi32, #tpu.memory_space<vmem>>, vector<1x2x7xi32>,
    %c4_i32 = arith.constant 4 : i32
    %126 = arith.addi %0, %c4_i32 : i32
    %c4 = arith.constant 4 : index
    %c0_40 = arith.constant 0 : index
    %c0_41 = arith.constant 0 : index
    %127 = vector.load %arg1[%c4, %c0_40, %c0_41] : memref<8x2x7xf32, #tpu.memory_space<vmem>>, vector<1x2x7xf32>
    %128 = vector.shape_cast %127 : vector<1x2x7xf32> to vector<2x7xf32>
    %129 = vector.shape_cast %121 : vector<2x7xf32> to vector<2x7x1xf32>
    %130 = vector.broadcast %129 : vector<2x7x1xf32> to vector<2x7x7xf32>
    %131 = arith.addf %130, %6 : vector<2x7x7xf32>
    %cst_42 = arith.constant dense<0xFF800000> : vector<2x7xf32>
    %132 = vector.multi_reduction <maximumf>, %131, %cst_42 [1] : vector<2x7x7xf32> to vector<2x7xf32>
    %133 = vector.shape_cast %132 : vector<2x7xf32> to vector<2x1x7xf32>
    %134 = vector.broadcast %133 : vector<2x1x7xf32> to vector<2x7x7xf32>
    %135 = arith.cmpf oeq, %131, %134 : vector<2x7x7xf32>
    %c7_i32_43 = arith.constant 7 : i32
    %136 = vector.broadcast %c7_i32_43 : i32 to vector<2x7x7xi32>
    %137 = arith.select %135, %7, %136 : vector<2x7x7xi1>, vector<2x7x7xi32>
    %cst_44 = arith.constant dense<2147483647> : vector<2x7xi32>
    %138 = vector.multi_reduction <minsi>, %137, %cst_44 [1] : vector<2x7x7xi32> to vector<2x7xi32>
    %139 = arith.addf %132, %128 : vector<2x7xf32>
    %140 = vector.broadcast %126 : i32 to vector<2x1xi32>
    %141 = arith.cmpi slt, %140, %2 : vector<2x1xi32>
    %c0_i32_45 = arith.constant 0 : i32
    %142 = vector.shape_cast %141 : vector<2x1xi1> to vector<2x1xi1>
    %143 = vector.broadcast %142 : vector<2x1xi1> to vector<2x7xi1>
    %144 = vector.broadcast %c0_i32_45 : i32 to vector<2x7xi32>
    %145 = arith.select %143, %138, %144 : vector<2x7xi1>, vector<2x7xi32>
    %146 = vector.shape_cast %141 : vector<2x1xi1> to vector<2x1xi1>
    %147 = vector.broadcast %146 : vector<2x1xi1> to vector<2x7xi1>
    %148 = arith.select %147, %139, %121 : vector<2x7xi1>, vector<2x7xf32>
    %149 = arith.index_cast %126 : i32 to index
    %c0_46 = arith.constant 0 : index
    %c0_47 = arith.constant 0 : index
    %150 = vector.load %arg6[%149, %c0_46, %c0_47] : memref<8x2x7xi32, #tpu.memory_space<vmem>>, vector<1x2x7xi32>
    %151 = vector.shape_cast %150 : vector<1x2x7xi32> to vector<2x7xi32>
    %152 = vector.shape_cast %145 : vector<2x7xi32> to vector<1x2x7xi32>
    tpu.vector_store %arg6[%149, %c0_46, %c0_47], %152 {strides = array<i32>} : memref<8x2x7xi32, #tpu.memory_space<vmem>>, vector<1x2x7xi32>,
    %c5_i32 = arith.constant 5 : i32
    %153 = arith.addi %0, %c5_i32 : i32
    %c5 = arith.constant 5 : index
    %c0_48 = arith.constant 0 : index
    %c0_49 = arith.constant 0 : index
    %154 = vector.load %arg1[%c5, %c0_48, %c0_49] : memref<8x2x7xf32, #tpu.memory_space<vmem>>, vector<1x2x7xf32>
    %155 = vector.shape_cast %154 : vector<1x2x7xf32> to vector<2x7xf32>
    %156 = vector.shape_cast %148 : vector<2x7xf32> to vector<2x7x1xf32>
    %157 = vector.broadcast %156 : vector<2x7x1xf32> to vector<2x7x7xf32>
    %158 = arith.addf %157, %6 : vector<2x7x7xf32>
    %cst_50 = arith.constant dense<0xFF800000> : vector<2x7xf32>
    %159 = vector.multi_reduction <maximumf>, %158, %cst_50 [1] : vector<2x7x7xf32> to vector<2x7xf32>
    %160 = vector.shape_cast %159 : vector<2x7xf32> to vector<2x1x7xf32>
    %161 = vector.broadcast %160 : vector<2x1x7xf32> to vector<2x7x7xf32>
    %162 = arith.cmpf oeq, %158, %161 : vector<2x7x7xf32>
    %c7_i32_51 = arith.constant 7 : i32
    %163 = vector.broadcast %c7_i32_51 : i32 to vector<2x7x7xi32>
    %164 = arith.select %162, %7, %163 : vector<2x7x7xi1>, vector<2x7x7xi32>
    %cst_52 = arith.constant dense<2147483647> : vector<2x7xi32>
    %165 = vector.multi_reduction <minsi>, %164, %cst_52 [1] : vector<2x7x7xi32> to vector<2x7xi32>
    %166 = arith.addf %159, %155 : vector<2x7xf32>
    %167 = vector.broadcast %153 : i32 to vector<2x1xi32>
    %168 = arith.cmpi slt, %167, %2 : vector<2x1xi32>
    %c0_i32_53 = arith.constant 0 : i32
    %169 = vector.shape_cast %168 : vector<2x1xi1> to vector<2x1xi1>
    %170 = vector.broadcast %169 : vector<2x1xi1> to vector<2x7xi1>
    %171 = vector.broadcast %c0_i32_53 : i32 to vector<2x7xi32>
    %172 = arith.select %170, %165, %171 : vector<2x7xi1>, vector<2x7xi32>
    %173 = vector.shape_cast %168 : vector<2x1xi1> to vector<2x1xi1>
    %174 = vector.broadcast %173 : vector<2x1xi1> to vector<2x7xi1>
    %175 = arith.select %174, %166, %148 : vector<2x7xi1>, vector<2x7xf32>
    %176 = arith.index_cast %153 : i32 to index
    %c0_54 = arith.constant 0 : index
    %c0_55 = arith.constant 0 : index
    %177 = vector.load %arg6[%176, %c0_54, %c0_55] : memref<8x2x7xi32, #tpu.memory_space<vmem>>, vector<1x2x7xi32>
    %178 = vector.shape_cast %177 : vector<1x2x7xi32> to vector<2x7xi32>
    %179 = vector.shape_cast %172 : vector<2x7xi32> to vector<1x2x7xi32>
    tpu.vector_store %arg6[%176, %c0_54, %c0_55], %179 {strides = array<i32>} : memref<8x2x7xi32, #tpu.memory_space<vmem>>, vector<1x2x7xi32>,
    %c6_i32 = arith.constant 6 : i32
    %180 = arith.addi %0, %c6_i32 : i32
    %c6 = arith.constant 6 : index
    %c0_56 = arith.constant 0 : index
    %c0_57 = arith.constant 0 : index
    %181 = vector.load %arg1[%c6, %c0_56, %c0_57] : memref<8x2x7xf32, #tpu.memory_space<vmem>>, vector<1x2x7xf32>
    %182 = vector.shape_cast %181 : vector<1x2x7xf32> to vector<2x7xf32>
    %183 = vector.shape_cast %175 : vector<2x7xf32> to vector<2x7x1xf32>
    %184 = vector.broadcast %183 : vector<2x7x1xf32> to vector<2x7x7xf32>
    %185 = arith.addf %184, %6 : vector<2x7x7xf32>
    %cst_58 = arith.constant dense<0xFF800000> : vector<2x7xf32>
    %186 = vector.multi_reduction <maximumf>, %185, %cst_58 [1] : vector<2x7x7xf32> to vector<2x7xf32>
    %187 = vector.shape_cast %186 : vector<2x7xf32> to vector<2x1x7xf32>
    %188 = vector.broadcast %187 : vector<2x1x7xf32> to vector<2x7x7xf32>
    %189 = arith.cmpf oeq, %185, %188 : vector<2x7x7xf32>
    %c7_i32_59 = arith.constant 7 : i32
    %190 = vector.broadcast %c7_i32_59 : i32 to vector<2x7x7xi32>
    %191 = arith.select %189, %7, %190 : vector<2x7x7xi1>, vector<2x7x7xi32>
    %cst_60 = arith.constant dense<2147483647> : vector<2x7xi32>
    %192 = vector.multi_reduction <minsi>, %191, %cst_60 [1] : vector<2x7x7xi32> to vector<2x7xi32>
    %193 = arith.addf %186, %182 : vector<2x7xf32>
    %194 = vector.broadcast %180 : i32 to vector<2x1xi32>
    %195 = arith.cmpi slt, %194, %2 : vector<2x1xi32>
    %c0_i32_61 = arith.constant 0 : i32
    %196 = vector.shape_cast %195 : vector<2x1xi1> to vector<2x1xi1>
    %197 = vector.broadcast %196 : vector<2x1xi1> to vector<2x7xi1>
    %198 = vector.broadcast %c0_i32_61 : i32 to vector<2x7xi32>
    %199 = arith.select %197, %192, %198 : vector<2x7xi1>, vector<2x7xi32>
    %200 = vector.shape_cast %195 : vector<2x1xi1> to vector<2x1xi1>
    %201 = vector.broadcast %200 : vector<2x1xi1> to vector<2x7xi1>
    %202 = arith.select %201, %193, %175 : vector<2x7xi1>, vector<2x7xf32>
    %203 = arith.index_cast %180 : i32 to index
    %c0_62 = arith.constant 0 : index
    %c0_63 = arith.constant 0 : index
    %204 = vector.load %arg6[%203, %c0_62, %c0_63] : memref<8x2x7xi32, #tpu.memory_space<vmem>>, vector<1x2x7xi32>
    %205 = vector.shape_cast %204 : vector<1x2x7xi32> to vector<2x7xi32>
    %206 = vector.shape_cast %199 : vector<2x7xi32> to vector<1x2x7xi32>
    tpu.vector_store %arg6[%203, %c0_62, %c0_63], %206 {strides = array<i32>} : memref<8x2x7xi32, #tpu.memory_space<vmem>>, vector<1x2x7xi32>,
    %c7_i32_64 = arith.constant 7 : i32
    %207 = arith.addi %0, %c7_i32_64 : i32
    %c7 = arith.constant 7 : index
    %c0_65 = arith.constant 0 : index
    %c0_66 = arith.constant 0 : index
    %208 = vector.load %arg1[%c7, %c0_65, %c0_66] : memref<8x2x7xf32, #tpu.memory_space<vmem>>, vector<1x2x7xf32>
    %209 = vector.shape_cast %208 : vector<1x2x7xf32> to vector<2x7xf32>
    %210 = vector.shape_cast %202 : vector<2x7xf32> to vector<2x7x1xf32>
    %211 = vector.broadcast %210 : vector<2x7x1xf32> to vector<2x7x7xf32>
    %212 = arith.addf %211, %6 : vector<2x7x7xf32>
    %cst_67 = arith.constant dense<0xFF800000> : vector<2x7xf32>
    %213 = vector.multi_reduction <maximumf>, %212, %cst_67 [1] : vector<2x7x7xf32> to vector<2x7xf32>
    %214 = vector.shape_cast %213 : vector<2x7xf32> to vector<2x1x7xf32>
    %215 = vector.broadcast %214 : vector<2x1x7xf32> to vector<2x7x7xf32>
    %216 = arith.cmpf oeq, %212, %215 : vector<2x7x7xf32>
    %c7_i32_68 = arith.constant 7 : i32
    %217 = vector.broadcast %c7_i32_68 : i32 to vector<2x7x7xi32>
    %218 = arith.select %216, %7, %217 : vector<2x7x7xi1>, vector<2x7x7xi32>
    %cst_69 = arith.constant dense<2147483647> : vector<2x7xi32>
    %219 = vector.multi_reduction <minsi>, %218, %cst_69 [1] : vector<2x7x7xi32> to vector<2x7xi32>
    %220 = arith.addf %213, %209 : vector<2x7xf32>
    %221 = vector.broadcast %207 : i32 to vector<2x1xi32>
    %222 = arith.cmpi slt, %221, %2 : vector<2x1xi32>
    %c0_i32_70 = arith.constant 0 : i32
    %223 = vector.shape_cast %222 : vector<2x1xi1> to vector<2x1xi1>
    %224 = vector.broadcast %223 : vector<2x1xi1> to vector<2x7xi1>
    %225 = vector.broadcast %c0_i32_70 : i32 to vector<2x7xi32>
    %226 = arith.select %224, %219, %225 : vector<2x7xi1>, vector<2x7xi32>
    %227 = vector.shape_cast %222 : vector<2x1xi1> to vector<2x1xi1>
    %228 = vector.broadcast %227 : vector<2x1xi1> to vector<2x7xi1>
    %229 = arith.select %228, %220, %202 : vector<2x7xi1>, vector<2x7xf32>
    %230 = arith.index_cast %207 : i32 to index
    %c0_71 = arith.constant 0 : index
    %c0_72 = arith.constant 0 : index
    %231 = vector.load %arg6[%230, %c0_71, %c0_72] : memref<8x2x7xi32, #tpu.memory_space<vmem>>, vector<1x2x7xi32>
    %232 = vector.shape_cast %231 : vector<1x2x7xi32> to vector<2x7xi32>
    %233 = vector.shape_cast %226 : vector<2x7xi32> to vector<1x2x7xi32>
    tpu.vector_store %arg6[%230, %c0_71, %c0_72], %233 {strides = array<i32>} : memref<8x2x7xi32, #tpu.memory_space<vmem>>, vector<1x2x7xi32>,
    %c0_73 = arith.constant 0 : index
    %c0_74 = arith.constant 0 : index
    %234 = vector.load %arg5[%c0_73, %c0_74] : memref<2x7xf32, #tpu.memory_space<vmem>>, vector<2x7xf32>
    tpu.vector_store %arg5[%c0_73, %c0_74], %229 {strides = array<i32>} : memref<2x7xf32, #tpu.memory_space<vmem>>, vector<2x7xf32>,
    %c0_i32_75 = arith.constant 0 : i32
    %235 = arith.cmpi eq, %arg0, %c0_i32_75 : i32
    %236 = arith.extui %235 : i1 to i32
    %c0_i32_76 = arith.constant 0 : i32
    %237 = arith.cmpi ne, %236, %c0_i32_76 : i32
    scf.if %237 {
      %238 = vector.shape_cast %229 : vector<2x7xf32> to vector<2x7x1xf32>
      %239 = vector.broadcast %238 : vector<2x7x1xf32> to vector<2x7x7xf32>
      %240 = arith.addf %239, %6 : vector<2x7x7xf32>
      %cst_77 = arith.constant dense<0xFF800000> : vector<2x7xf32>
      %241 = vector.multi_reduction <maximumf>, %240, %cst_77 [1] : vector<2x7x7xf32> to vector<2x7xf32>
      %242 = vector.shape_cast %241 : vector<2x7xf32> to vector<2x1x7xf32>
      %243 = vector.broadcast %242 : vector<2x1x7xf32> to vector<2x7x7xf32>
      %244 = arith.cmpf oeq, %240, %243 : vector<2x7x7xf32>
      %c7_i32_78 = arith.constant 7 : i32
      %245 = vector.broadcast %c7_i32_78 : i32 to vector<2x7x7xi32>
      %246 = arith.select %244, %7, %245 : vector<2x7x7xi1>, vector<2x7x7xi32>
      %cst_79 = arith.constant dense<2147483647> : vector<2x7xi32>
      %247 = vector.multi_reduction <minsi>, %246, %cst_79 [1] : vector<2x7x7xi32> to vector<2x7xi32>
      %248 = vector.extract_strided_slice %247 {offsets = [0, 6], sizes = [2, 1], strides = [1, 1]} : vector<2x7xi32> to vector<2x1xi32>
      %249 = tpu.iota {dimensions = array<i32: 1>} : vector<2x7xi32>
      %250 = tpu.iota {dimensions = array<i32: 1>} : vector<2x8xi32>
      %c7_i32_80 = arith.constant 7 : i32
      %251 = vector.broadcast %c7_i32_80 : i32 to vector<2x8xi32>
      %252 = arith.cmpi eq, %250, %251 : vector<2x8xi32>
      %c0_i32_81 = arith.constant 0 : i32
      %253 = vector.broadcast %c0_i32_81 : i32 to vector<2x8xi32>
      %254 = vector.shape_cast %248 : vector<2x1xi32> to vector<2x1xi32>
      %255 = vector.broadcast %254 : vector<2x1xi32> to vector<2x8xi32>
      %256 = arith.select %252, %255, %253 : vector<2x8xi1>, vector<2x8xi32>
      %c0_i32_82 = arith.constant 0 : i32
      %c7_i32_83 = arith.constant 7 : i32
      %257 = arith.addi %c0_i32_82, %c7_i32_83 : i32
      %c1_i32_84 = arith.constant 1 : i32
      %258:2 = scf.for %arg7 = %c0_i32_82 to %257 step %c1_i32_84 iter_args(%arg8 = %248, %arg9 = %256) -> (vector<2x1xi32>, vector<2x8xi32>)  : i32 {
        %c6_i32_88 = arith.constant 6 : i32
        %260 = arith.subi %c6_i32_88, %arg7 : i32
        %c1_i32_89 = arith.constant 1 : i32
        %261 = arith.addi %260, %c1_i32_89 : i32
        %262 = arith.index_cast %261 : i32 to index
        %c0_90 = arith.constant 0 : index
        %c0_91 = arith.constant 0 : index
        %263 = vector.load %arg6[%262, %c0_90, %c0_91] : memref<8x2x7xi32, #tpu.memory_space<vmem>>, vector<1x2x7xi32>
        %264 = vector.shape_cast %263 : vector<1x2x7xi32> to vector<2x7xi32>
        %265 = vector.broadcast %arg8 : vector<2x1xi32> to vector<2x7xi32>
        %266 = arith.cmpi eq, %249, %265 : vector<2x7xi32>
        %c0_i32_92 = arith.constant 0 : i32
        %267 = vector.broadcast %c0_i32_92 : i32 to vector<2x7xi32>
        %268 = arith.select %266, %264, %267 : vector<2x7xi1>, vector<2x7xi32>
        %cst_93 = arith.constant dense<0> : vector<2xi32>
        %269 = vector.multi_reduction <add>, %268, %cst_93 [1] : vector<2x7xi32> to vector<2xi32>
        %270 = vector.shape_cast %269 : vector<2xi32> to vector<2x1xi32>
        %c1_i32_94 = arith.constant 1 : i32
        %271 = vector.broadcast %c1_i32_94 : i32 to vector<2x1xi32>
        %272 = arith.subi %2, %271 : vector<2x1xi32>
        %273 = vector.broadcast %260 : i32 to vector<2x1xi32>
        %274 = arith.cmpi eq, %273, %272 : vector<2x1xi32>
        %275 = arith.select %274, %248, %270 : vector<2x1xi1>, vector<2x1xi32>
        %276 = vector.broadcast %260 : i32 to vector<2x8xi32>
        %277 = arith.cmpi eq, %250, %276 : vector<2x8xi32>
        %278 = vector.shape_cast %275 : vector<2x1xi32> to vector<2x1xi32>
        %279 = vector.broadcast %278 : vector<2x1xi32> to vector<2x8xi32>
        %280 = arith.select %277, %279, %arg9 : vector<2x8xi1>, vector<2x8xi32>
        scf.yield %275, %280 : vector<2x1xi32>, vector<2x8xi32>
      }
      %c7_i32_85 = arith.constant 7 : i32
      %c0_86 = arith.constant 0 : index
      %c0_87 = arith.constant 0 : index
      %259 = vector.load %arg4[%c0_86, %c0_87] : memref<2x8xi32, #tpu.memory_space<vmem>>, vector<2x8xi32>
      tpu.vector_store %arg4[%c0_86, %c0_87], %258#1 {strides = array<i32>} : memref<2x8xi32, #tpu.memory_space<vmem>>, vector<2x8xi32>,
    } else {
    }
    return
  }
  func.func @transform_0(%arg0: i32) -> (i32, i32, i32) {
    %c0_i32 = arith.constant 0 : i32
    %c0_i32_0 = arith.constant 0 : i32
    %c0_i32_1 = arith.constant 0 : i32
    return %arg0, %c0_i32, %c0_i32_0 : i32, i32, i32
  }
  func.func @transform_1(%arg0: i32) -> (i32, i32) {
    %c0_i32 = arith.constant 0 : i32
    %c0_i32_0 = arith.constant 0 : i32
    %c0_i32_1 = arith.constant 0 : i32
    return %c0_i32, %c0_i32_0 : i32, i32
  }
  func.func @transform_2(%arg0: i32) -> (i32, i32) {
    %c0_i32 = arith.constant 0 : i32
    %c0_i32_0 = arith.constant 0 : i32
    %c0_i32_1 = arith.constant 0 : i32
    return %c0_i32, %c0_i32_0 : i32, i32
  }
  func.func @transform_3(%arg0: i32) -> (i32, i32) {
    %c0_i32 = arith.constant 0 : i32
    %c0_i32_0 = arith.constant 0 : i32
    %c0_i32_1 = arith.constant 0 : i32
    return %c0_i32, %c0_i32_0 : i32, i32
  }
}

</mosaic_0001>

<llo_original>
// kernel: tpu_custom_call.1
$region0: #{tpu_custom_call.1}
  #allocation0 [shape = 'u32[]', space=smem, size = 0x4, offset = 0x4, fixed_abs, tag = 'smem constant byte address 0x4 - core index']
  #allocation1 [shape = 'u32[144,128]{1,0:T(1,128)}', space=vmem, size = 0x12000, scoped, tag = 'internal scratch']
  #allocation2 [shape = 'f32[2,7]{1,0:T(2,128)}', space=vmem, size = 0x400, scoped, tag = 'scratch operand']
  #allocation3 [shape = 's32[8,2,7]{2,1,0:T(2,128)}', space=vmem, size = 0x2000, scoped, tag = 'scratch operand']
  %s0 = inlined_call_operand.vmem [shape: f32[8,2,7], index: 0, kind: input, shape index: {}]
  %s1 = inlined_call_operand.vmem [shape: f32[7,7], index: 1, kind: input, shape index: {}]
  %s2 = inlined_call_operand.vmem [shape: s32[2,1], index: 2, kind: input, shape index: {}]
  %s3 = inlined_call_operand.hbm [shape: s32[2,8], index: 3, kind: output, shape index: {}]
  %s4 = sld [smem:[#allocation0]]
  $region37: #{tpu_custom_call.1} parent=0
    _
  %s6 = ssub.s32 1, %s4
  %s7 = scalar_select 0, %s6, %s4
  $region1: #{tpu_custom_call.1} parent=0
    #allocation4 [shape = 'u8[1024]{0}', space=vmem, size = 0x400, scoped, tag = 'output window, operand 0, single buffered']
    #allocation5 [shape = 's32[1]{0}', space=sflag, size = 0x4, scoped, tag = 'scoped memory for tpu_custom_call.1']
    %8 = vsyncpa [#allocation5], 0
    // Predicated region
    $region2: #{tpu_custom_call.1} parent=1 // pred_check
      _
    $region3: #{tpu_custom_call.1} parent=1 // pred_check_branch
      %10 = sbr.rel (0) target = $region5
    $region4: #{tpu_custom_call.1} parent=1 // pred_region
      _
    $region5: #{tpu_custom_call.1} parent=1 // pred_fallthru
      _
    // Predicated region
    $region6: #{tpu_custom_call.1} parent=1 // pred_check
      _
    $region7: #{tpu_custom_call.1} parent=1 // pred_check_branch
      %12 = sbr.rel (0) target = $region9
    $region8: #{tpu_custom_call.1} parent=1 // pred_region
      _
    $region9: #{tpu_custom_call.1} parent=1 // pred_fallthru
      _
    // Predicated region
    $region10: #{tpu_custom_call.1} parent=1 // pred_check
      _
    $region11: #{tpu_custom_call.1} parent=1 // pred_check_branch
      %14 = sbr.rel (0) target = $region13
    $region12: #{tpu_custom_call.1} parent=1 // pred_region
      _
    $region13: #{tpu_custom_call.1} parent=1 // pred_fallthru
      _
    %s15 = smul.u32 0, 8
    %v16 = vld [vmem:[%s1] sm:$0x7f]
    %v17 = vld [vmem:[%s2] sm:$0x3]
    %v18 = vlaneseq
    %v19 = vshrl.u32 %v18, 7
    %p20 = scmp.eq.s32.totalorder 0, 0
    // Predicated region
    $region14: #{tpu_custom_call.1} parent=1 // pred_check
      %p21 = pneg %p20
    $region15: #{tpu_custom_call.1} parent=1 // pred_check_branch
      %23 = sbr.rel (%p21) target = $region17
    $region16: #{tpu_custom_call.1} parent=1 // pred_region
      %vm24 = vcmask 50176
      %25 = vst.msk [vmem:[#allocation2] sm:$0x3] %vm24, 0.0
    $region17: #{tpu_custom_call.1} parent=1 // pred_fallthru
      _
    %v26 = vld [vmem:[#allocation2] sm:$0x3]
    %v27 = vld [vmem:[%s0] sm:$0x3]
    %v28 = vlaneseq
    %v29 = vshrl.u32 %v28, 7
    %v30 = vsub.s32 0, %v29
    %v31 = vrot.slane %v26, %v30
    %33 = vbcast.lane.b32.xlu0 %v31, 256
    %v34 = vpop.permute.xlu0 %33
    %v35 = vlaneseq
    %v36 = vshrl.u32 %v35, 7
    %v37 = vsub.s32 1, %v36
    %v38 = vrot.slane %v26, %v37
    %40 = vbcast.lane.b32.xlu0 %v38, 256
    %v41 = vpop.permute.xlu0 %40
    %v42 = vadd.f32 %v34, %v16
    %v43 = vadd.f32 %v41, %v16
    %vm44 = vcmask 55296
    %v45 = vsel %vm44, %v42, -inf
    %v46 = vrot.slane %v45, 4
    %v47 = vmax.f32 %v45, %v46
    %v48 = vrot.slane %v47, 2
    %v49 = vmax.f32 %v47, %v48
    %v50 = vrot.slane %v49, 1
    %v51 = vmax.f32 %v49, %v50
    %v52 = vsel %vm44, %v43, -inf
    %v53 = vrot.slane %v52, 4
    %v54 = vmax.f32 %v52, %v53
    %v55 = vrot.slane %v54, 2
    %v56 = vmax.f32 %v54, %v55
    %v57 = vrot.slane %v56, 1
    %v58 = vmax.f32 %v56, %v57
    %vm59 = vcmp.eq.f32.partialorder %v42, %v51
    %vm60 = vcmp.eq.f32.partialorder %v43, %v58
    %v61 = vsel %vm59, %v19, 7
    %v62 = vsel %vm60, %v19, 7
    %v63 = vsel %vm44, %v61, 2147483647
    %v64 = vrot.slane %v63, 4
    %vm65 = vcmp.lt.s32.totalorder %v63, %v64
    %v66 = vsel %vm65, %v63, %v64
    %v67 = vrot.slane %v66, 2
    %vm68 = vcmp.lt.s32.totalorder %v66, %v67
    %v69 = vsel %vm68, %v66, %v67
    %v70 = vrot.slane %v69, 1
    %vm71 = vcmp.lt.s32.totalorder %v69, %v70
    %v72 = vsel %vm71, %v69, %v70
    %v73 = vsel %vm44, %v62, 2147483647
    %v74 = vrot.slane %v73, 4
    %vm75 = vcmp.lt.s32.totalorder %v73, %v74
    %v76 = vsel %vm75, %v73, %v74
    %v77 = vrot.slane %v76, 2
    %vm78 = vcmp.lt.s32.totalorder %v76, %v77
    %v79 = vsel %vm78, %v76, %v77
    %v80 = vrot.slane %v79, 1
    %vm81 = vcmp.lt.s32.totalorder %v79, %v80
    %v82 = vsel %vm81, %v79, %v80
    %v84 = vrot.slane %v27, 1
    %v87 = vadd.f32 %v51, %v27
    %v88 = vadd.f32 %v58, %v84
    %v89 = vstv %s15
    %vm90 = vcmp.lt.s32.totalorder %v89, %v17
    %v91 = vsel %vm90, 1, 0
    %92 = vset.pattern.permute.xlu0 0
    %93 = vperm.xlu0 %92, %v91
    %v94 = vpop.permute.xlu0 %93
    %vm95 = vcmp.eq.s32.totalorder %v94, 1
    %vm96 = vcmask 1041409
    %v97 = vsel %vm96, %v82, %v72
    %v98 = vsel %vm95, %v97, 0
    %v101 = vrot.slane %v88, 7
    %v102 = vsel %vm96, %v101, %v87
    %v104 = vsel %vm95, %v102, %v26
    %p105 = scmp.eq.s32.totalorder %s15, 0
    %v106 = vlaneseq
    %v107 = vshrl.u32 %v106, 7
    %v108 = vsub.s32 5, %v107
    %v109 = vrot.slane %v16, %v108
    %v110 = vadd.f32 %v27, %v109
    %s111 = scalar_select %p105, 1, 0
    %v112 = vstv %s111
    %vm113 = vcmp.eq.s32.totalorder %v112, 1
    %v114 = vsel %vm113, %v110, %v104
    %v115 = vsel %vm113, 0, %v98
    %s116 = smul.u32 %s15, 2
    %s117 = scalar_lea.vmem [#allocation3], %s116
    %vm118 = vcmask 50176
    %119 = vst.msk [vmem:[%s117] sm:$0x3] %vm118, %v115
    %s120 = sadd.s32 %s15, 1
    %s121 = scalar_lea.vmem %s0, 2
    %v122 = vld [vmem:[%s121] sm:$0x3]
    %v123 = vlaneseq
    %v124 = vshrl.u32 %v123, 7
    %v125 = vsub.s32 0, %v124
    %v126 = vrot.slane %v114, %v125
    %128 = vbcast.lane.b32.xlu0 %v126, 256
    %v129 = vpop.permute.xlu0 %128
    %v130 = vlaneseq
    %v131 = vshrl.u32 %v130, 7
    %v132 = vsub.s32 1, %v131
    %v133 = vrot.slane %v114, %v132
    %135 = vbcast.lane.b32.xlu0 %v133, 256
    %v136 = vpop.permute.xlu0 %135
    %v137 = vadd.f32 %v129, %v16
    %v138 = vadd.f32 %v136, %v16
    %v139 = vsel %vm44, %v137, -inf
    %v140 = vrot.slane %v139, 4
    %v141 = vmax.f32 %v139, %v140
    %v142 = vrot.slane %v141, 2
    %v143 = vmax.f32 %v141, %v142
    %v144 = vrot.slane %v143, 1
    %v145 = vmax.f32 %v143, %v144
    %v146 = vsel %vm44, %v138, -inf
    %v147 = vrot.slane %v146, 4
    %v148 = vmax.f32 %v146, %v147
    %v149 = vrot.slane %v148, 2
    %v150 = vmax.f32 %v148, %v149
    %v151 = vrot.slane %v150, 1
    %v152 = vmax.f32 %v150, %v151
    %vm153 = vcmp.eq.f32.partialorder %v137, %v145
    %vm154 = vcmp.eq.f32.partialorder %v138, %v152
    %v155 = vsel %vm153, %v19, 7
    %v156 = vsel %vm154, %v19, 7
    %v157 = vsel %vm44, %v155, 2147483647
    %v158 = vrot.slane %v157, 4
    %vm159 = vcmp.lt.s32.totalorder %v157, %v158
    %v160 = vsel %vm159, %v157, %v158
    %v161 = vrot.slane %v160, 2
    %vm162 = vcmp.lt.s32.totalorder %v160, %v161
    %v163 = vsel %vm162, %v160, %v161
    %v164 = vrot.slane %v163, 1
    %vm165 = vcmp.lt.s32.totalorder %v163, %v164
    %v166 = vsel %vm165, %v163, %v164
    %v167 = vsel %vm44, %v156, 2147483647
    %v168 = vrot.slane %v167, 4
    %vm169 = vcmp.lt.s32.totalorder %v167, %v168
    %v170 = vsel %vm169, %v167, %v168
    %v171 = vrot.slane %v170, 2
    %vm172 = vcmp.lt.s32.totalorder %v170, %v171
    %v173 = vsel %vm172, %v170, %v171
    %v174 = vrot.slane %v173, 1
    %vm175 = vcmp.lt.s32.totalorder %v173, %v174
    %v176 = vsel %vm175, %v173, %v174
    %v178 = vrot.slane %v122, 1
    %v181 = vadd.f32 %v145, %v122
    %v182 = vadd.f32 %v152, %v178
    %v183 = vstv %s120
    %vm184 = vcmp.lt.s32.totalorder %v183, %v17
    %v185 = vsel %vm184, 1, 0
    %186 = vset.pattern.permute.xlu0 0
    %187 = vperm.xlu0 %186, %v185
    %v188 = vpop.permute.xlu0 %187
    %vm189 = vcmp.eq.s32.totalorder %v188, 1
    %v190 = vsel %vm96, %v176, %v166
    %v191 = vsel %vm189, %v190, 0
    %v194 = vrot.slane %v182, 7
    %v195 = vsel %vm96, %v194, %v181
    %v197 = vsel %vm189, %v195, %v114
    %s198 = smul.u32 %s120, 2
    %s199 = scalar_lea.vmem [#allocation3], %s198
    %200 = vst.msk [vmem:[%s199] sm:$0x3] %vm118, %v191
    %s201 = sadd.s32 %s15, 2
    %s202 = scalar_lea.vmem %s0, 4
    %v203 = vld [vmem:[%s202] sm:$0x3]
    %v204 = vlaneseq
    %v205 = vshrl.u32 %v204, 7
    %v206 = vsub.s32 0, %v205
    %v207 = vrot.slane %v197, %v206
    %209 = vbcast.lane.b32.xlu0 %v207, 256
    %v210 = vpop.permute.xlu0 %209
    %v211 = vlaneseq
    %v212 = vshrl.u32 %v211, 7
    %v213 = vsub.s32 1, %v212
    %v214 = vrot.slane %v197, %v213
    %216 = vbcast.lane.b32.xlu0 %v214, 256
    %v217 = vpop.permute.xlu0 %216
    %v218 = vadd.f32 %v210, %v16
    %v219 = vadd.f32 %v217, %v16
    %v220 = vsel %vm44, %v218, -inf
    %v221 = vrot.slane %v220, 4
    %v222 = vmax.f32 %v220, %v221
    %v223 = vrot.slane %v222, 2
    %v224 = vmax.f32 %v222, %v223
    %v225 = vrot.slane %v224, 1
    %v226 = vmax.f32 %v224, %v225
    %v227 = vsel %vm44, %v219, -inf
    %v228 = vrot.slane %v227, 4
    %v229 = vmax.f32 %v227, %v228
    %v230 = vrot.slane %v229, 2
    %v231 = vmax.f32 %v229, %v230
    %v232 = vrot.slane %v231, 1
    %v233 = vmax.f32 %v231, %v232
    %vm234 = vcmp.eq.f32.partialorder %v218, %v226
    %vm235 = vcmp.eq.f32.partialorder %v219, %v233
    %v236 = vsel %vm234, %v19, 7
    %v237 = vsel %vm235, %v19, 7
    %v238 = vsel %vm44, %v236, 2147483647
    %v239 = vrot.slane %v238, 4
    %vm240 = vcmp.lt.s32.totalorder %v238, %v239
    %v241 = vsel %vm240, %v238, %v239
    %v242 = vrot.slane %v241, 2
    %vm243 = vcmp.lt.s32.totalorder %v241, %v242
    %v244 = vsel %vm243, %v241, %v242
    %v245 = vrot.slane %v244, 1
    %vm246 = vcmp.lt.s32.totalorder %v244, %v245
    %v247 = vsel %vm246, %v244, %v245
    %v248 = vsel %vm44, %v237, 2147483647
    %v249 = vrot.slane %v248, 4
    %vm250 = vcmp.lt.s32.totalorder %v248, %v249
    %v251 = vsel %vm250, %v248, %v249
    %v252 = vrot.slane %v251, 2
    %vm253 = vcmp.lt.s32.totalorder %v251, %v252
    %v254 = vsel %vm253, %v251, %v252
    %v255 = vrot.slane %v254, 1
    %vm256 = vcmp.lt.s32.totalorder %v254, %v255
    %v257 = vsel %vm256, %v254, %v255
    %v259 = vrot.slane %v203, 1
    %v262 = vadd.f32 %v226, %v203
    %v263 = vadd.f32 %v233, %v259
    %v264 = vstv %s201
    %vm265 = vcmp.lt.s32.totalorder %v264, %v17
    %v266 = vsel %vm265, 1, 0
    %267 = vset.pattern.permute.xlu0 0
    %268 = vperm.xlu0 %267, %v266
    %v269 = vpop.permute.xlu0 %268
    %vm270 = vcmp.eq.s32.totalorder %v269, 1
    %v271 = vsel %vm96, %v257, %v247
    %v272 = vsel %vm270, %v271, 0
    %v275 = vrot.slane %v263, 7
    %v276 = vsel %vm96, %v275, %v262
    %v278 = vsel %vm270, %v276, %v197
    %s279 = smul.u32 %s201, 2
    %s280 = scalar_lea.vmem [#allocation3], %s279
    %281 = vst.msk [vmem:[%s280] sm:$0x3] %vm118, %v272
    %s282 = sadd.s32 %s15, 3
    %s283 = scalar_lea.vmem %s0, 6
    %v284 = vld [vmem:[%s283] sm:$0x3]
    %v285 = vlaneseq
    %v286 = vshrl.u32 %v285, 7
    %v287 = vsub.s32 0, %v286
    %v288 = vrot.slane %v278, %v287
    %290 = vbcast.lane.b32.xlu0 %v288, 256
    %v291 = vpop.permute.xlu0 %290
    %v292 = vlaneseq
    %v293 = vshrl.u32 %v292, 7
    %v294 = vsub.s32 1, %v293
    %v295 = vrot.slane %v278, %v294
    %297 = vbcast.lane.b32.xlu0 %v295, 256
    %v298 = vpop.permute.xlu0 %297
    %v299 = vadd.f32 %v291, %v16
    %v300 = vadd.f32 %v298, %v16
    %v301 = vsel %vm44, %v299, -inf
    %v302 = vrot.slane %v301, 4
    %v303 = vmax.f32 %v301, %v302
    %v304 = vrot.slane %v303, 2
    %v305 = vmax.f32 %v303, %v304
    %v306 = vrot.slane %v305, 1
    %v307 = vmax.f32 %v305, %v306
    %v308 = vsel %vm44, %v300, -inf
    %v309 = vrot.slane %v308, 4
    %v310 = vmax.f32 %v308, %v309
    %v311 = vrot.slane %v310, 2
    %v312 = vmax.f32 %v310, %v311
    %v313 = vrot.slane %v312, 1
    %v314 = vmax.f32 %v312, %v313
    %vm315 = vcmp.eq.f32.partialorder %v299, %v307
    %vm316 = vcmp.eq.f32.partialorder %v300, %v314
    %v317 = vsel %vm315, %v19, 7
    %v318 = vsel %vm316, %v19, 7
    %v319 = vsel %vm44, %v317, 2147483647
    %v320 = vrot.slane %v319, 4
    %vm321 = vcmp.lt.s32.totalorder %v319, %v320
    %v322 = vsel %vm321, %v319, %v320
    %v323 = vrot.slane %v322, 2
    %vm324 = vcmp.lt.s32.totalorder %v322, %v323
    %v325 = vsel %vm324, %v322, %v323
    %v326 = vrot.slane %v325, 1
    %vm327 = vcmp.lt.s32.totalorder %v325, %v326
    %v328 = vsel %vm327, %v325, %v326
    %v329 = vsel %vm44, %v318, 2147483647
    %v330 = vrot.slane %v329, 4
    %vm331 = vcmp.lt.s32.totalorder %v329, %v330
    %v332 = vsel %vm331, %v329, %v330
    %v333 = vrot.slane %v332, 2
    %vm334 = vcmp.lt.s32.totalorder %v332, %v333
    %v335 = vsel %vm334, %v332, %v333
    %v336 = vrot.slane %v335, 1
    %vm337 = vcmp.lt.s32.totalorder %v335, %v336
    %v338 = vsel %vm337, %v335, %v336
    %v340 = vrot.slane %v284, 1
    %v343 = vadd.f32 %v307, %v284
    %v344 = vadd.f32 %v314, %v340
    %v345 = vstv %s282
    %vm346 = vcmp.lt.s32.totalorder %v345, %v17
    %v347 = vsel %vm346, 1, 0
    %348 = vset.pattern.permute.xlu0 0
    %349 = vperm.xlu0 %348, %v347
    %v350 = vpop.permute.xlu0 %349
    %vm351 = vcmp.eq.s32.totalorder %v350, 1
    %v352 = vsel %vm96, %v338, %v328
    %v353 = vsel %vm351, %v352, 0
    %v356 = vrot.slane %v344, 7
    %v357 = vsel %vm96, %v356, %v343
    %v359 = vsel %vm351, %v357, %v278
    %s360 = smul.u32 %s282, 2
    %s361 = scalar_lea.vmem [#allocation3], %s360
    %362 = vst.msk [vmem:[%s361] sm:$0x3] %vm118, %v353
    %s363 = sadd.s32 %s15, 4
    %s364 = scalar_lea.vmem %s0, 8
    %v365 = vld [vmem:[%s364] sm:$0x3]
    %v366 = vlaneseq
    %v367 = vshrl.u32 %v366, 7
    %v368 = vsub.s32 0, %v367
    %v369 = vrot.slane %v359, %v368
    %371 = vbcast.lane.b32.xlu0 %v369, 256
    %v372 = vpop.permute.xlu0 %371
    %v373 = vlaneseq
    %v374 = vshrl.u32 %v373, 7
    %v375 = vsub.s32 1, %v374
    %v376 = vrot.slane %v359, %v375
    %378 = vbcast.lane.b32.xlu0 %v376, 256
    %v379 = vpop.permute.xlu0 %378
    %v380 = vadd.f32 %v372, %v16
    %v381 = vadd.f32 %v379, %v16
    %v382 = vsel %vm44, %v380, -inf
    %v383 = vrot.slane %v382, 4
    %v384 = vmax.f32 %v382, %v383
    %v385 = vrot.slane %v384, 2
    %v386 = vmax.f32 %v384, %v385
    %v387 = vrot.slane %v386, 1
    %v388 = vmax.f32 %v386, %v387
    %v389 = vsel %vm44, %v381, -inf
    %v390 = vrot.slane %v389, 4
    %v391 = vmax.f32 %v389, %v390
    %v392 = vrot.slane %v391, 2
    %v393 = vmax.f32 %v391, %v392
    %v394 = vrot.slane %v393, 1
    %v395 = vmax.f32 %v393, %v394
    %vm396 = vcmp.eq.f32.partialorder %v380, %v388
    %vm397 = vcmp.eq.f32.partialorder %v381, %v395
    %v398 = vsel %vm396, %v19, 7
    %v399 = vsel %vm397, %v19, 7
    %v400 = vsel %vm44, %v398, 2147483647
    %v401 = vrot.slane %v400, 4
    %vm402 = vcmp.lt.s32.totalorder %v400, %v401
    %v403 = vsel %vm402, %v400, %v401
    %v404 = vrot.slane %v403, 2
    %vm405 = vcmp.lt.s32.totalorder %v403, %v404
    %v406 = vsel %vm405, %v403, %v404
    %v407 = vrot.slane %v406, 1
    %vm408 = vcmp.lt.s32.totalorder %v406, %v407
    %v409 = vsel %vm408, %v406, %v407
    %v410 = vsel %vm44, %v399, 2147483647
    %v411 = vrot.slane %v410, 4
    %vm412 = vcmp.lt.s32.totalorder %v410, %v411
    %v413 = vsel %vm412, %v410, %v411
    %v414 = vrot.slane %v413, 2
    %vm415 = vcmp.lt.s32.totalorder %v413, %v414
    %v416 = vsel %vm415, %v413, %v414
    %v417 = vrot.slane %v416, 1
    %vm418 = vcmp.lt.s32.totalorder %v416, %v417
    %v419 = vsel %vm418, %v416, %v417
    %v421 = vrot.slane %v365, 1
    %v424 = vadd.f32 %v388, %v365
    %v425 = vadd.f32 %v395, %v421
    %v426 = vstv %s363
    %vm427 = vcmp.lt.s32.totalorder %v426, %v17
    %v428 = vsel %vm427, 1, 0
    %429 = vset.pattern.permute.xlu0 0
    %430 = vperm.xlu0 %429, %v428
    %v431 = vpop.permute.xlu0 %430
    %vm432 = vcmp.eq.s32.totalorder %v431, 1
    %v433 = vsel %vm96, %v419, %v409
    %v434 = vsel %vm432, %v433, 0
    %v437 = vrot.slane %v425, 7
    %v438 = vsel %vm96, %v437, %v424
    %v440 = vsel %vm432, %v438, %v359
    %s441 = smul.u32 %s363, 2
    %s442 = scalar_lea.vmem [#allocation3], %s441
    %443 = vst.msk [vmem:[%s442] sm:$0x3] %vm118, %v434
    %s444 = sadd.s32 %s15, 5
    %s445 = scalar_lea.vmem %s0, 10
    %v446 = vld [vmem:[%s445] sm:$0x3]
    %v447 = vlaneseq
    %v448 = vshrl.u32 %v447, 7
    %v449 = vsub.s32 0, %v448
    %v450 = vrot.slane %v440, %v449
    %452 = vbcast.lane.b32.xlu0 %v450, 256
    %v453 = vpop.permute.xlu0 %452
    %v454 = vlaneseq
    %v455 = vshrl.u32 %v454, 7
    %v456 = vsub.s32 1, %v455
    %v457 = vrot.slane %v440, %v456
    %459 = vbcast.lane.b32.xlu0 %v457, 256
    %v460 = vpop.permute.xlu0 %459
    %v461 = vadd.f32 %v453, %v16
    %v462 = vadd.f32 %v460, %v16
    %v463 = vsel %vm44, %v461, -inf
    %v464 = vrot.slane %v463, 4
    %v465 = vmax.f32 %v463, %v464
    %v466 = vrot.slane %v465, 2
    %v467 = vmax.f32 %v465, %v466
    %v468 = vrot.slane %v467, 1
    %v469 = vmax.f32 %v467, %v468
    %v470 = vsel %vm44, %v462, -inf
    %v471 = vrot.slane %v470, 4
    %v472 = vmax.f32 %v470, %v471
    %v473 = vrot.slane %v472, 2
    %v474 = vmax.f32 %v472, %v473
    %v475 = vrot.slane %v474, 1
    %v476 = vmax.f32 %v474, %v475
    %vm477 = vcmp.eq.f32.partialorder %v461, %v469
    %vm478 = vcmp.eq.f32.partialorder %v462, %v476
    %v479 = vsel %vm477, %v19, 7
    %v480 = vsel %vm478, %v19, 7
    %v481 = vsel %vm44, %v479, 2147483647
    %v482 = vrot.slane %v481, 4
    %vm483 = vcmp.lt.s32.totalorder %v481, %v482
    %v484 = vsel %vm483, %v481, %v482
    %v485 = vrot.slane %v484, 2
    %vm486 = vcmp.lt.s32.totalorder %v484, %v485
    %v487 = vsel %vm486, %v484, %v485
    %v488 = vrot.slane %v487, 1
    %vm489 = vcmp.lt.s32.totalorder %v487, %v488
    %v490 = vsel %vm489, %v487, %v488
    %v491 = vsel %vm44, %v480, 2147483647
    %v492 = vrot.slane %v491, 4
    %vm493 = vcmp.lt.s32.totalorder %v491, %v492
    %v494 = vsel %vm493, %v491, %v492
    %v495 = vrot.slane %v494, 2
    %vm496 = vcmp.lt.s32.totalorder %v494, %v495
    %v497 = vsel %vm496, %v494, %v495
    %v498 = vrot.slane %v497, 1
    %vm499 = vcmp.lt.s32.totalorder %v497, %v498
    %v500 = vsel %vm499, %v497, %v498
    %v502 = vrot.slane %v446, 1
    %v505 = vadd.f32 %v469, %v446
    %v506 = vadd.f32 %v476, %v502
    %v507 = vstv %s444
    %vm508 = vcmp.lt.s32.totalorder %v507, %v17
    %v509 = vsel %vm508, 1, 0
    %510 = vset.pattern.permute.xlu0 0
    %511 = vperm.xlu0 %510, %v509
    %v512 = vpop.permute.xlu0 %511
    %vm513 = vcmp.eq.s32.totalorder %v512, 1
    %v514 = vsel %vm96, %v500, %v490
    %v515 = vsel %vm513, %v514, 0
    %v518 = vrot.slane %v506, 7
    %v519 = vsel %vm96, %v518, %v505
    %v521 = vsel %vm513, %v519, %v440
    %s522 = smul.u32 %s444, 2
    %s523 = scalar_lea.vmem [#allocation3], %s522
    %524 = vst.msk [vmem:[%s523] sm:$0x3] %vm118, %v515
    %s525 = sadd.s32 %s15, 6
    %s526 = scalar_lea.vmem %s0, 12
    %v527 = vld [vmem:[%s526] sm:$0x3]
    %v528 = vlaneseq
    %v529 = vshrl.u32 %v528, 7
    %v530 = vsub.s32 0, %v529
    %v531 = vrot.slane %v521, %v530
    %533 = vbcast.lane.b32.xlu0 %v531, 256
    %v534 = vpop.permute.xlu0 %533
    %v535 = vlaneseq
    %v536 = vshrl.u32 %v535, 7
    %v537 = vsub.s32 1, %v536
    %v538 = vrot.slane %v521, %v537
    %540 = vbcast.lane.b32.xlu0 %v538, 256
    %v541 = vpop.permute.xlu0 %540
    %v542 = vadd.f32 %v534, %v16
    %v543 = vadd.f32 %v541, %v16
    %v544 = vsel %vm44, %v542, -inf
    %v545 = vrot.slane %v544, 4
    %v546 = vmax.f32 %v544, %v545
    %v547 = vrot.slane %v546, 2
    %v548 = vmax.f32 %v546, %v547
    %v549 = vrot.slane %v548, 1
    %v550 = vmax.f32 %v548, %v549
    %v551 = vsel %vm44, %v543, -inf
    %v552 = vrot.slane %v551, 4
    %v553 = vmax.f32 %v551, %v552
    %v554 = vrot.slane %v553, 2
    %v555 = vmax.f32 %v553, %v554
    %v556 = vrot.slane %v555, 1
    %v557 = vmax.f32 %v555, %v556
    %vm558 = vcmp.eq.f32.partialorder %v542, %v550
    %vm559 = vcmp.eq.f32.partialorder %v543, %v557
    %v560 = vsel %vm558, %v19, 7
    %v561 = vsel %vm559, %v19, 7
    %v562 = vsel %vm44, %v560, 2147483647
    %v563 = vrot.slane %v562, 4
    %vm564 = vcmp.lt.s32.totalorder %v562, %v563
    %v565 = vsel %vm564, %v562, %v563
    %v566 = vrot.slane %v565, 2
    %vm567 = vcmp.lt.s32.totalorder %v565, %v566
    %v568 = vsel %vm567, %v565, %v566
    %v569 = vrot.slane %v568, 1
    %vm570 = vcmp.lt.s32.totalorder %v568, %v569
    %v571 = vsel %vm570, %v568, %v569
    %v572 = vsel %vm44, %v561, 2147483647
    %v573 = vrot.slane %v572, 4
    %vm574 = vcmp.lt.s32.totalorder %v572, %v573
    %v575 = vsel %vm574, %v572, %v573
    %v576 = vrot.slane %v575, 2
    %vm577 = vcmp.lt.s32.totalorder %v575, %v576
    %v578 = vsel %vm577, %v575, %v576
    %v579 = vrot.slane %v578, 1
    %vm580 = vcmp.lt.s32.totalorder %v578, %v579
    %v581 = vsel %vm580, %v578, %v579
    %v583 = vrot.slane %v527, 1
    %v586 = vadd.f32 %v550, %v527
    %v587 = vadd.f32 %v557, %v583
    %v588 = vstv %s525
    %vm589 = vcmp.lt.s32.totalorder %v588, %v17
    %v590 = vsel %vm589, 1, 0
    %591 = vset.pattern.permute.xlu0 0
    %592 = vperm.xlu0 %591, %v590
    %v593 = vpop.permute.xlu0 %592
    %vm594 = vcmp.eq.s32.totalorder %v593, 1
    %v595 = vsel %vm96, %v581, %v571
    %v596 = vsel %vm594, %v595, 0
    %v599 = vrot.slane %v587, 7
    %v600 = vsel %vm96, %v599, %v586
    %v602 = vsel %vm594, %v600, %v521
    %s603 = smul.u32 %s525, 2
    %s604 = scalar_lea.vmem [#allocation3], %s603
    %605 = vst.msk [vmem:[%s604] sm:$0x3] %vm118, %v596
    %s606 = sadd.s32 %s15, 7
    %s607 = scalar_lea.vmem %s0, 14
    %v608 = vld [vmem:[%s607] sm:$0x3]
    %v609 = vlaneseq
    %v610 = vshrl.u32 %v609, 7
    %v611 = vsub.s32 0, %v610
    %v612 = vrot.slane %v602, %v611
    %614 = vbcast.lane.b32.xlu0 %v612, 256
    %v615 = vpop.permute.xlu0 %614
    %v616 = vlaneseq
    %v617 = vshrl.u32 %v616, 7
    %v618 = vsub.s32 1, %v617
    %v619 = vrot.slane %v602, %v618
    %621 = vbcast.lane.b32.xlu0 %v619, 256
    %v622 = vpop.permute.xlu0 %621
    %v623 = vadd.f32 %v615, %v16
    %v624 = vadd.f32 %v622, %v16
    %v625 = vsel %vm44, %v623, -inf
    %v626 = vrot.slane %v625, 4
    %v627 = vmax.f32 %v625, %v626
    %v628 = vrot.slane %v627, 2
    %v629 = vmax.f32 %v627, %v628
    %v630 = vrot.slane %v629, 1
    %v631 = vmax.f32 %v629, %v630
    %v632 = vsel %vm44, %v624, -inf
    %v633 = vrot.slane %v632, 4
    %v634 = vmax.f32 %v632, %v633
    %v635 = vrot.slane %v634, 2
    %v636 = vmax.f32 %v634, %v635
    %v637 = vrot.slane %v636, 1
    %v638 = vmax.f32 %v636, %v637
    %vm639 = vcmp.eq.f32.partialorder %v623, %v631
    %vm640 = vcmp.eq.f32.partialorder %v624, %v638
    %v641 = vsel %vm639, %v19, 7
    %v642 = vsel %vm640, %v19, 7
    %v643 = vsel %vm44, %v641, 2147483647
    %v644 = vrot.slane %v643, 4
    %vm645 = vcmp.lt.s32.totalorder %v643, %v644
    %v646 = vsel %vm645, %v643, %v644
    %v647 = vrot.slane %v646, 2
    %vm648 = vcmp.lt.s32.totalorder %v646, %v647
    %v649 = vsel %vm648, %v646, %v647
    %v650 = vrot.slane %v649, 1
    %vm651 = vcmp.lt.s32.totalorder %v649, %v650
    %v652 = vsel %vm651, %v649, %v650
    %v653 = vsel %vm44, %v642, 2147483647
    %v654 = vrot.slane %v653, 4
    %vm655 = vcmp.lt.s32.totalorder %v653, %v654
    %v656 = vsel %vm655, %v653, %v654
    %v657 = vrot.slane %v656, 2
    %vm658 = vcmp.lt.s32.totalorder %v656, %v657
    %v659 = vsel %vm658, %v656, %v657
    %v660 = vrot.slane %v659, 1
    %vm661 = vcmp.lt.s32.totalorder %v659, %v660
    %v662 = vsel %vm661, %v659, %v660
    %v664 = vrot.slane %v608, 1
    %v667 = vadd.f32 %v631, %v608
    %v668 = vadd.f32 %v638, %v664
    %v669 = vstv %s606
    %vm670 = vcmp.lt.s32.totalorder %v669, %v17
    %v671 = vsel %vm670, 1, 0
    %672 = vset.pattern.permute.xlu0 0
    %673 = vperm.xlu0 %672, %v671
    %v674 = vpop.permute.xlu0 %673
    %vm675 = vcmp.eq.s32.totalorder %v674, 1
    %v676 = vsel %vm96, %v662, %v652
    %v677 = vsel %vm675, %v676, 0
    %v680 = vrot.slane %v668, 7
    %v681 = vsel %vm96, %v680, %v667
    %v683 = vsel %vm675, %v681, %v602
    %s684 = smul.u32 %s606, 2
    %s685 = scalar_lea.vmem [#allocation3], %s684
    %686 = vst.msk [vmem:[%s685] sm:$0x3] %vm118, %v677
    %687 = vst.msk [vmem:[#allocation2] sm:$0x3] %vm118, %v683
    // Predicated region
    $region18: #{tpu_custom_call.1} parent=1 // pred_check
      %p688 = pneg %p20
    $region19: #{tpu_custom_call.1} parent=1 // pred_check_branch
      %690 = sbr.rel (%p688) target = $region21
    $region20: #{tpu_custom_call.1} parent=1 // pred_region
      %v691 = vlaneseq
      %v692 = vshrl.u32 %v691, 7
      %v693 = vsub.s32 0, %v692
      %v694 = vrot.slane %v683, %v693
      %696 = vbcast.lane.b32.xlu0 %v694, 256
      %v697 = vpop.permute.xlu0 %696
      %v698 = vlaneseq
      %v699 = vshrl.u32 %v698, 7
      %v700 = vsub.s32 1, %v699
      %v701 = vrot.slane %v683, %v700
      %703 = vbcast.lane.b32.xlu0 %v701, 256
      %v704 = vpop.permute.xlu0 %703
      %v705 = vadd.f32 %v697, %v16
      %v706 = vadd.f32 %v704, %v16
      %v707 = vsel %vm44, %v705, -inf
      %v708 = vrot.slane %v707, 4
      %v709 = vmax.f32 %v707, %v708
      %v710 = vrot.slane %v709, 2
      %v711 = vmax.f32 %v709, %v710
      %v712 = vrot.slane %v711, 1
      %v713 = vmax.f32 %v711, %v712
      %v714 = vsel %vm44, %v706, -inf
      %v715 = vrot.slane %v714, 4
      %v716 = vmax.f32 %v714, %v715
      %v717 = vrot.slane %v716, 2
      %v718 = vmax.f32 %v716, %v717
      %v719 = vrot.slane %v718, 1
      %v720 = vmax.f32 %v718, %v719
      %vm721 = vcmp.eq.f32.partialorder %v705, %v713
      %vm722 = vcmp.eq.f32.partialorder %v706, %v720
      %v723 = vsel %vm721, %v19, 7
      %v724 = vsel %vm722, %v19, 7
      %v725 = vsel %vm44, %v723, 2147483647
      %v726 = vrot.slane %v725, 4
      %vm727 = vcmp.lt.s32.totalorder %v725, %v726
      %v728 = vsel %vm727, %v725, %v726
      %v729 = vrot.slane %v728, 2
      %vm730 = vcmp.lt.s32.totalorder %v728, %v729
      %v731 = vsel %vm730, %v728, %v729
      %v732 = vrot.slane %v731, 1
      %vm733 = vcmp.lt.s32.totalorder %v731, %v732
      %v734 = vsel %vm733, %v731, %v732
      %v735 = vsel %vm44, %v724, 2147483647
      %v736 = vrot.slane %v735, 4
      %vm737 = vcmp.lt.s32.totalorder %v735, %v736
      %v738 = vsel %vm737, %v735, %v736
      %v739 = vrot.slane %v738, 2
      %vm740 = vcmp.lt.s32.totalorder %v738, %v739
      %v741 = vsel %vm740, %v738, %v739
      %v742 = vrot.slane %v741, 1
      %vm743 = vcmp.lt.s32.totalorder %v741, %v742
      %v744 = vsel %vm743, %v741, %v742
      %v745 = vlaneseq
      %v746 = vand.u32 %v745, 127
      %vm747 = vcmp.eq.s32.totalorder %v746, 7
      %748 = vset.pattern.permute.xlu0 6
      %749 = vperm.xlu0 %748, %v734
      %v750 = vpop.permute.xlu0 %749
      %751 = vset.pattern.permute.xlu0 6
      %752 = vperm.xlu0 %751, %v744
      %v753 = vpop.permute.xlu0 %752
      %v754 = vsel %vm96, %v753, %v750
      %v755 = vsel %vm747, %v754, 0
      %v756 = vsel %vm96, %v744, %v734
      %757 = vrot.lane.b32.xlu0 %v756, 122
      %v758 = vpop.permute.xlu0 %757
      loop: start=0, step=1, limit=7
      $region22: #{tpu_custom_call.1} parent=20 // loop_pre_header
        _
      $region23: #{tpu_custom_call.1} parent=20 // loop_header
        %s760 = sphi 0, %s764
        %p761 = scmp.ge.s32.totalorder %s760, 7
        %v765 = vphi %v758, %v793
        %v766 = vphi %v755, %v798
      $region24: #{tpu_custom_call.1} parent=20 // loop_header_branch
        %763 = sbr.rel (%p761) target = $region28
      $region25: #{tpu_custom_call.1} parent=20 // loop_body
        %s767 = ssub.s32 6, %s760
        %s768 = ssub.s32 7, %s760
        %s769 = smul.u32 %s768, 2
        %s770 = scalar_lea.vmem [#allocation3], %s769
        %v771 = vld [vmem:[%s770] sm:$0x3]
        %772 = vset.pattern.permute.xlu0 0
        %773 = vperm.xlu0 %772, %v765
        %v774 = vpop.permute.xlu0 %773
        %vm775 = vcmp.eq.s32.totalorder %v746, %v774
        %v776 = vsel %vm775, %v771, 0
        %v777 = vsel %vm118, %v776, 0
        %v778 = vand.u32 %v777, 65535
        %v779 = vshrl.u32 %v777, 16
        %v780 = vcvt.s32.f32 %v778
        %v781 = vcvt.s32.f32 %v779
        %782 = vadd.xlane.f32.xlu0 %v780
        %v783 = vpop.xlane.xlu0 %782
        %784 = vadd.xlane.f32.xlu0 %v781
        %v785 = vpop.xlane.xlu0 %784
        %v786 = vcvt.f32.s32 %v783
        %v787 = vcvt.f32.s32 %v785
        %v788 = vshll.u32 %v787, 16
        %v789 = vadd.s32 %v788, %v786
        %v790 = vsub.s32 %v17, 1
        %v791 = vstv %s767
        %vm792 = vcmp.eq.s32.totalorder %v791, %v790
        %v793 = vsel %vm792, %v758, %v789
        %vm794 = vcmp.eq.s32.totalorder %v746, %v791
        %795 = vset.pattern.permute.xlu0 0
        %796 = vperm.xlu0 %795, %v793
        %v797 = vpop.permute.xlu0 %796
        %v798 = vsel %vm794, %v797, %v766
      $region26: #{tpu_custom_call.1} parent=20 // loop_footer
        %s764 = sadd.s32 1, %s760
      $region27: #{tpu_custom_call.1} parent=20 // loop_footer_branch
        %759 = sbr.rel target = $region23
      $region28: #{tpu_custom_call.1} parent=20 // loop_exit
        _
      %vm799 = vcmask 58368
      %800 = vst.msk [vmem:[#allocation4] sm:$0x3] %vm799, %v766
    $region21: #{tpu_custom_call.1} parent=1 // pred_fallthru
      _
    // Predicated region
    $region29: #{tpu_custom_call.1} parent=1 // pred_check
      _
    $region30: #{tpu_custom_call.1} parent=1 // pred_check_branch
      %802 = sbr.rel (0) target = $region32
    $region31: #{tpu_custom_call.1} parent=1 // pred_region
      %s804 = ssub.s32 32, 32
      %805 = vsyncadd [#allocation5], %s804
      %s807 = sshll.u32 [#allocation4], 4
      %s808 = int_to_ptr.vmem [resolvable:$true] %s807
      %810 = dma.vmem_to_hbm [thread:$0]  %s808, 32, %s3, [#allocation5]
    $region32: #{tpu_custom_call.1} parent=1 // pred_fallthru
      _
    // Predicated region
    $region33: #{tpu_custom_call.1} parent=1 // pred_check
      _
    $region34: #{tpu_custom_call.1} parent=1 // pred_check_branch
      %812 = sbr.rel (0) target = $region36
    $region35: #{tpu_custom_call.1} parent=1 // pred_region
      %813 = dma.done [#allocation5], 32
    $region36: #{tpu_custom_call.1} parent=1 // pred_fallthru
      _
    %814 = vsyncpa [#allocation5], 1

</llo_original>
